<compile_context>
chip_gen: v6e
topology: v6e:2x2x1
jax: 0.10.0
libtpu: 0.0.40
codegen_flags: <defaults>
</compile_context>

<pallas_src>
import jax
import jax.numpy as jnp
from jax.experimental import pallas as pl
from jax.experimental.pallas import tpu as pltpu


def _round_up(x, m):
    return ((x + m - 1) // m) * m


def _int8_linear_kernel(x_ref, wt_ref, scale_ref, bias_ref, o_ref):
    # x_ref:     (TM, K)   activation tile, full contraction dim (input dtype)
    # wt_ref:    (K, TN)   int8 pre-transposed weight tile
    # scale_ref: (1, TN)   f32 per-output-feature dequant scale
    # bias_ref:  (1, TN)   f32
    # o_ref:     (TM, TN)  output tile (bf16 by default)
    x_bf = x_ref[...].astype(jnp.bfloat16)
    w_bf = wt_ref[...].astype(jnp.bfloat16)      # int8 values are exact in bf16
    acc = jnp.dot(x_bf, w_bf, preferred_element_type=jnp.float32)
    o_ref[...] = (acc * scale_ref[...] + bias_ref[...]).astype(o_ref.dtype)


def prepare_int8_linear_params(w_int8, scale, bias):
    """One-time parameter prep (call at load time, NOT per forward).

    Transposes the int8 weight to [D_in, D_out] and zero-pads both dims to
    multiples of 128 so the kernel's contraction dim and output lane dim are
    (8,128)-aligned and the output store is lane-dense on D_out.
    """
    d_out, d_in = w_int8.shape
    k_pad = _round_up(d_in, 128)
    n_pad = _round_up(d_out, 128)
    wt = jnp.zeros((k_pad, n_pad), jnp.int8).at[:d_in, :d_out].set(
        jnp.transpose(w_int8))
    scale_p = jnp.zeros((1, n_pad), jnp.float32).at[0, :d_out].set(
        scale.astype(jnp.float32))
    bias_p = jnp.zeros((1, n_pad), jnp.float32).at[0, :d_out].set(
        bias.astype(jnp.float32))
    return {"wt": wt, "scale": scale_p, "bias": bias_p,
            "d_in": d_in, "d_out": d_out}


def _pick_tm(n, cap=512):
    """Row tile: single M tile when it fits, else the size with least waste."""
    n8 = _round_up(n, 8)
    if n8 <= cap:
        return n8
    best, best_waste = cap, _round_up(n, cap) - n
    for t in range(256, cap + 1, 8):
        waste = _round_up(n, t) - n
        if waste < best_waste:
            best, best_waste = t, waste
    return best


def _pick_tn(d_out_pad, cap=1024):
    """Output-feature tile: largest 128-multiple divisor of d_out_pad <= cap."""
    if d_out_pad <= cap:
        return d_out_pad
    best = 128
    for t in range(128, cap + 1, 128):
        if d_out_pad % t == 0:
            best = t
    return best


def int8_linear(x2d, params, *, out_dtype=jnp.bfloat16, tm=None, tn=None):
    """x2d: (N, D_in).  params: output of prepare_int8_linear_params."""
    n, d_in = x2d.shape
    assert d_in == params["d_in"], "activation feature dim mismatch"
    wt, scale_p, bias_p = params["wt"], params["scale"], params["bias"]
    k_pad, d_out_pad = wt.shape
    d_out = params["d_out"]

    # NOTE: the contraction axis is not tiled; this assumes CLIP-scale D_in
    # (<= a few thousand), where the full-K working set fits VMEM comfortably
    # even on v7x (64 MiB physical, 32 MiB default scoped).
    if tm is None:
        tm = _pick_tm(n)
    if tn is None:
        tn = _pick_tn(d_out_pad)
    assert tm % 8 == 0 and tn % 128 == 0 and d_out_pad % tn == 0

    n_pad = _round_up(n, tm)
    # Pad activations only when needed (common CLIP dims are already aligned).
    if n_pad != n or k_pad != d_in:
        x_p = jnp.pad(x2d, ((0, n_pad - n), (0, k_pad - d_in)))
    else:
        x_p = x2d

    grid = (n_pad // tm, d_out_pad // tn)

    y_pad = pl.pallas_call(
        _int8_linear_kernel,
        out_shape=jax.ShapeDtypeStruct((n_pad, d_out_pad), out_dtype),
        grid_spec=pltpu.PrefetchScalarGridSpec(
            num_scalar_prefetch=0,
            grid=grid,
            in_specs=[
                pl.BlockSpec((tm, k_pad), lambda i, j: (i, 0)),   # x tile
                pl.BlockSpec((k_pad, tn), lambda i, j: (0, j)),   # W^T tile
                pl.BlockSpec((1, tn), lambda i, j: (0, j)),       # scale
                pl.BlockSpec((1, tn), lambda i, j: (0, j)),       # bias
            ],
            out_specs=pl.BlockSpec((tm, tn), lambda i, j: (i, j)),
        ),
        compiler_params=pltpu.CompilerParams(
            dimension_semantics=("parallel", "parallel"),
        ),
    )(x_p, wt, scale_p, bias_p)

    return y_pad[:n, :d_out]


def image_projection_forward(x, params, *, out_dtype=jnp.bfloat16):
    """Accepts x of shape (..., D_in); returns (..., D_out)."""
    d_in = x.shape[-1]
    lead = x.shape[:-1]
    y2d = int8_linear(x.reshape(-1, d_in), params, out_dtype=out_dtype)
    return y2d.reshape(*lead, params["d_out"])


def make_int8_linear_params(key, clip_embedding_dim, target_dim):
    """Deterministic synthetic params: symmetric per-row int8 quantization."""
    kw, kb = jax.random.split(key)
    w_fp = jax.random.normal(kw, (target_dim, clip_embedding_dim),
                             dtype=jnp.float32) * 0.02
    max_abs = jnp.max(jnp.abs(w_fp), axis=1, keepdims=True)          # (D_out, 1)
    scale = (max_abs / 127.0).squeeze(-1)                            # (D_out,)
    w_int8 = jnp.clip(jnp.round(w_fp / (scale[:, None] + 1e-12)),
                      -127, 127).astype(jnp.int8)
    bias = jax.random.normal(kb, (target_dim,), dtype=jnp.float32) * 0.01
    return w_int8, scale, bias


def _reference(x2d, w_int8, scale, bias):
    # Mirror the kernel's bf16 activation rounding; weights are exact in bf16.
    x_bf = x2d.astype(jnp.bfloat16).astype(jnp.float32)
    acc = x_bf @ w_int8.astype(jnp.float32).T
    return acc * scale[None, :] + bias[None, :]


if __name__ == "__main__":
    key = jax.random.PRNGKey(0)
    k_x1, k_p1, k_x2, k_p2 = jax.random.split(key, 4)

    # --- Test 1: small CLIP-like projection (single-tile path) ---------------
    batch, seq = 2, 8
    clip_embedding_dim, target_dim = 32, 64
    x = jax.random.normal(k_x1, (batch, seq, clip_embedding_dim),
                          dtype=jnp.float32)
    w_int8, scale, bias = make_int8_linear_params(
        k_p1, clip_embedding_dim, target_dim)
    params = prepare_int8_linear_params(w_int8, scale, bias)   # one-time prep

    y = image_projection_forward(x, params)
    y = jax.block_until_ready(y)
    assert y.shape == (batch, seq, target_dim)
    assert y.dtype == jnp.bfloat16
    y_ref = _reference(x.reshape(-1, clip_embedding_dim), w_int8, scale,
                       bias).reshape(batch, seq, target_dim)
    assert jnp.allclose(y.astype(jnp.float32), y_ref, atol=1e-2, rtol=1e-2)

    # --- Test 2: non-aligned dims, multi-tile grid + padded/sliced path ------
    n2, d_in2, d_out2 = 18, 300, 320          # pads: rows->24, K->384, N->384
    x2 = jax.random.normal(k_x2, (n2, d_in2), dtype=jnp.float32)
    w2, s2, b2 = make_int8_linear_params(k_p2, d_in2, d_out2)
    params2 = prepare_int8_linear_params(w2, s2, b2)
    # Force small tiles to exercise a (3 x 3) grid with padding on every axis.
    y2 = int8_linear(x2, params2, tm=8, tn=128)
    y2 = jax.block_until_ready(y2)
    assert y2.shape == (n2, d_out2)
    y2_ref = _reference(x2, w2, s2, b2)
    assert jnp.allclose(y2.astype(jnp.float32), y2_ref, atol=2e-2, rtol=2e-2)

    print("KERNEL_OK")
</pallas_src>

<mosaic_0001>
module attributes {stable_mosaic.version = 11 : i64} {
  func.func @_int8_linear_kernel(%arg0: i32, %arg1: i32, %arg2: memref<16x128xf32, #tpu.memory_space<vmem>>, %arg3: memref<128x128xi8, #tpu.memory_space<vmem>>, %arg4: memref<1x128xf32, #tpu.memory_space<vmem>>, %arg5: memref<1x128xf32, #tpu.memory_space<vmem>>, %arg6: memref<16x128xbf16, #tpu.memory_space<vmem>>) attributes {dimension_semantics = [#tpu.dimension_semantics<parallel>, #tpu.dimension_semantics<parallel>], iteration_bounds = array<i64: 1, 1>, scalar_prefetch = 0 : i64, scratch_operands = 0 : i64, tpu.core_type = #tpu.core_type<tc>, window_params = [{transform_indices = @transform_0, window_bounds = array<i64: 16, 128>}, {transform_indices = @transform_1, window_bounds = array<i64: 128, 128>}, {transform_indices = @transform_2, window_bounds = array<i64: 1, 128>}, {transform_indices = @transform_3, window_bounds = array<i64: 1, 128>}, {transform_indices = @transform_4, window_bounds = array<i64: 16, 128>}]} {
    %c0 = arith.constant 0 : index
    %c0_0 = arith.constant 0 : index
    %0 = vector.load %arg2[%c0, %c0_0] : memref<16x128xf32, #tpu.memory_space<vmem>>, vector<16x128xf32>
    %1 = arith.truncf %0 : vector<16x128xf32> to vector<16x128xbf16>
    %c0_1 = arith.constant 0 : index
    %c0_2 = arith.constant 0 : index
    %2 = vector.load %arg3[%c0_1, %c0_2] : memref<128x128xi8, #tpu.memory_space<vmem>>, vector<128x128xi8>
    %3 = arith.sitofp %2 : vector<128x128xi8> to vector<128x128xbf16>
    %cst = arith.constant dense<0.000000e+00> : vector<16x128xf32>
    %4 = tpu.matmul %1, %3, %cst {dimension_numbers = #tpu.dot_dimension_numbers<[1], [0], [0], [1], [0, 0, 1, 1], [], []>} : vector<16x128xbf16>, vector<128x128xbf16>, vector<16x128xf32> -> vector<16x128xf32>
    %c0_3 = arith.constant 0 : index
    %c0_4 = arith.constant 0 : index
    %5 = vector.load %arg4[%c0_3, %c0_4] : memref<1x128xf32, #tpu.memory_space<vmem>>, vector<1x128xf32>
    %6 = vector.broadcast %5 : vector<1x128xf32> to vector<16x128xf32>
    %7 = arith.mulf %4, %6 : vector<16x128xf32>
    %c0_5 = arith.constant 0 : index
    %c0_6 = arith.constant 0 : index
    %8 = vector.load %arg5[%c0_5, %c0_6] : memref<1x128xf32, #tpu.memory_space<vmem>>, vector<1x128xf32>
    %9 = vector.broadcast %8 : vector<1x128xf32> to vector<16x128xf32>
    %10 = arith.addf %7, %9 : vector<16x128xf32>
    %11 = arith.truncf %10 : vector<16x128xf32> to vector<16x128xbf16>
    %c0_7 = arith.constant 0 : index
    %c0_8 = arith.constant 0 : index
    %12 = vector.load %arg6[%c0_7, %c0_8] : memref<16x128xbf16, #tpu.memory_space<vmem>>, vector<16x128xbf16>
    tpu.vector_store %arg6[%c0_7, %c0_8], %11 {strides = array<i32>} : memref<16x128xbf16, #tpu.memory_space<vmem>>, vector<16x128xbf16>,
    return
  }
  func.func @transform_0(%arg0: i32, %arg1: i32) -> (i32, i32) {
    %c0_i32 = arith.constant 0 : i32
    %c0_i32_0 = arith.constant 0 : i32
    return %arg0, %c0_i32 : i32, i32
  }
  func.func @transform_1(%arg0: i32, %arg1: i32) -> (i32, i32) {
    %c0_i32 = arith.constant 0 : i32
    %c0_i32_0 = arith.constant 0 : i32
    return %c0_i32, %arg1 : i32, i32
  }
  func.func @transform_2(%arg0: i32, %arg1: i32) -> (i32, i32) {
    %c0_i32 = arith.constant 0 : i32
    %c0_i32_0 = arith.constant 0 : i32
    return %c0_i32, %arg1 : i32, i32
  }
  func.func @transform_3(%arg0: i32, %arg1: i32) -> (i32, i32) {
    %c0_i32 = arith.constant 0 : i32
    %c0_i32_0 = arith.constant 0 : i32
    return %c0_i32, %arg1 : i32, i32
  }
  func.func @transform_4(%arg0: i32, %arg1: i32) -> (i32, i32) {
    %c0_i32 = arith.constant 0 : i32
    return %arg0, %arg1 : i32, i32
  }
}

</mosaic_0001>

<llo_original>
// kernel: tpu_custom_call.1
$region0: #{tpu_custom_call.1}
  #allocation0 [shape = 'u32[]', space=smem, size = 0x4, offset = 0x4, fixed_abs, tag = 'smem constant byte address 0x4 - core index']
  #allocation1 [shape = 'u32[144,128]{1,0:T(1,128)}', space=vmem, size = 0x12000, scoped, tag = 'internal scratch']
  %s0 = inlined_call_operand.hbm [shape: f32[16,128], index: 0, kind: input, shape index: {}]
  %s1 = inlined_call_operand.hbm [shape: s8[128,128], index: 1, kind: input, shape index: {}]
  %s2 = inlined_call_operand.vmem [shape: f32[1,128], index: 2, kind: input, shape index: {}]
  %s3 = inlined_call_operand.vmem [shape: f32[1,128], index: 3, kind: input, shape index: {}]
  %s4 = inlined_call_operand.hbm [shape: bf16[16,128], index: 4, kind: output, shape index: {}]
  %s5 = sld [smem:[#allocation0]]
  $region34: #{tpu_custom_call.1} parent=0
    _
  %s7 = ssub.s32 1, %s5
  %s8 = scalar_select 0, %s7, %s5
  $region1: #{tpu_custom_call.1} parent=0
    #allocation2 [shape = 'u8[8192]{0}', space=vmem, size = 0x2000, scoped, tag = 'input window, operand 0, single buffered']
    #allocation3 [shape = 's32[1]{0}', space=sflag, size = 0x4, scoped, tag = 'scoped memory for tpu_custom_call.1']
    #allocation4 [shape = 's32[1]{0}', space=sflag, size = 0x4, scoped, tag = 'scoped memory for tpu_custom_call.1']
    #allocation5 [shape = 'u8[16384]{0}', space=vmem, size = 0x4000, scoped, tag = 'input window, operand 1, single buffered']
    #allocation6 [shape = 's32[1]{0}', space=sflag, size = 0x4, scoped, tag = 'scoped memory for tpu_custom_call.1']
    #allocation7 [shape = 'u8[4096]{0}', space=vmem, size = 0x1000, scoped, tag = 'output window, operand 0, single buffered']
    %9 = vsyncpa [#allocation3], 0
    %10 = vsyncpa [#allocation6], 0
    %11 = vsyncpa [#allocation4], 0
    // Predicated region
    $region2: #{tpu_custom_call.1} parent=1 // pred_check
      _
    $region3: #{tpu_custom_call.1} parent=1 // pred_check_branch
      %13 = sbr.rel (0) target = $region5
    $region4: #{tpu_custom_call.1} parent=1 // pred_region
      %s15 = ssub.s32 256, 256
      %16 = vsyncadd [#allocation3], %s15
      %s17 = sshll.u32 [#allocation2], 4
      %s18 = int_to_ptr.vmem [resolvable:$true] %s17
      %23 = dma.hbm_to_vmem [thread:$0]  %s0, 256, %s18, [#allocation3], 128, 128, 8
    $region5: #{tpu_custom_call.1} parent=1 // pred_fallthru
      _
    // Predicated region
    $region6: #{tpu_custom_call.1} parent=1 // pred_check
      _
    $region7: #{tpu_custom_call.1} parent=1 // pred_check_branch
      %25 = sbr.rel (0) target = $region9
    $region8: #{tpu_custom_call.1} parent=1 // pred_region
      %s27 = ssub.s32 512, 512
      %28 = vsyncadd [#allocation6], %s27
      %s29 = sshll.u32 [#allocation5], 4
      %s30 = int_to_ptr.vmem [resolvable:$true] %s29
      %35 = dma.hbm_to_vmem [thread:$0]  %s1, 512, %s30, [#allocation6], 128, 128, 8
    $region9: #{tpu_custom_call.1} parent=1 // pred_fallthru
      _
    // Predicated region
    $region10: #{tpu_custom_call.1} parent=1 // pred_check
      _
    $region11: #{tpu_custom_call.1} parent=1 // pred_check_branch
      %37 = sbr.rel (0) target = $region13
    $region12: #{tpu_custom_call.1} parent=1 // pred_region
      _
    $region13: #{tpu_custom_call.1} parent=1 // pred_fallthru
      _
    // Predicated region
    $region14: #{tpu_custom_call.1} parent=1 // pred_check
      _
    $region15: #{tpu_custom_call.1} parent=1 // pred_check_branch
      %39 = sbr.rel (0) target = $region17
    $region16: #{tpu_custom_call.1} parent=1 // pred_region
      _
    $region17: #{tpu_custom_call.1} parent=1 // pred_fallthru
      _
    // Predicated region
    $region18: #{tpu_custom_call.1} parent=1 // pred_check
      _
    $region19: #{tpu_custom_call.1} parent=1 // pred_check_branch
      %41 = sbr.rel (0) target = $region21
    $region20: #{tpu_custom_call.1} parent=1 // pred_region
      %42 = dma.done [#allocation3], 256
    $region21: #{tpu_custom_call.1} parent=1 // pred_fallthru
      _
    // Predicated region
    $region22: #{tpu_custom_call.1} parent=1 // pred_check
      _
    $region23: #{tpu_custom_call.1} parent=1 // pred_check_branch
      %44 = sbr.rel (0) target = $region25
    $region24: #{tpu_custom_call.1} parent=1 // pred_region
      %45 = dma.done [#allocation6], 512
    $region25: #{tpu_custom_call.1} parent=1 // pred_fallthru
      _
    %v47 = vld [vmem:[#allocation2] sm:$0xff]
    %v48 = vld [vmem:[#allocation2 + $0x8] sm:$0xff]
    %v49 = vpack.c.bf16 %v48, %v47
    %v50 = vld [vmem:[#allocation5] sm:$0xff]
    %v51 = vld [vmem:[#allocation5 + $0x8] sm:$0xff]
    %v52 = vld [vmem:[#allocation5 + $0x10] sm:$0xff]
    %v53 = vld [vmem:[#allocation5 + $0x18] sm:$0xff]
    %v54 = vunpack.c.l.s8.bf16 %v50
    %v55 = vunpack.c.h.s8.bf16 %v50
    %v56 = vunpack.c.l.s8.bf16 %v51
    %v57 = vunpack.c.h.s8.bf16 %v51
    %v58 = vunpack.c.l.s8.bf16 %v52
    %v59 = vunpack.c.h.s8.bf16 %v52
    %v60 = vunpack.c.l.s8.bf16 %v53
    %v61 = vunpack.c.h.s8.bf16 %v53
    %62 = vmatprep.subr.bf16.mxu0 0
    %63 = vmatpush1.bf16.msra.mxu0 %v61
    %64 = vmatprep.subr.bf16.mxu0 0
    %65 = vmatpush1.bf16.msra.mxu0 %v60
    %66 = vmatprep.subr.bf16.mxu0 0
    %67 = vmatpush1.bf16.msra.mxu0 %v59
    %68 = vmatprep.subr.bf16.mxu0 0
    %69 = vmatpush1.bf16.msra.mxu0 %v58
    %70 = vmatprep.subr.bf16.mxu0 0
    %71 = vmatpush1.bf16.msra.mxu0 %v57
    %72 = vmatprep.subr.bf16.mxu0 0
    %73 = vmatpush1.bf16.msra.mxu0 %v56
    %74 = vmatprep.subr.bf16.mxu0 0
    %75 = vmatpush1.bf16.msra.mxu0 %v55
    %76 = vmatprep.subr.bf16.mxu0 0
    %77 = vmatpush1.bf16.msra.mxu0 %v54
    %78 = vmatprep.subr.bf16.mxu0 0
    %79 = vmatpush2.bf16.msra.mxu0 0
    %80 = vmatprep.subr.bf16.mxu0 0
    %81 = vmatpush2.bf16.msra.mxu0 0
    %82 = vmatprep.subr.bf16.mxu0 0
    %83 = vmatpush2.bf16.msra.mxu0 0
    %84 = vmatprep.subr.bf16.mxu0 0
    %85 = vmatpush2.bf16.msra.mxu0 0
    %86 = vmatprep.subr.bf16.mxu0 0
    %87 = vmatpush2.bf16.msra.mxu0 0
    %88 = vmatprep.subr.bf16.mxu0 0
    %89 = vmatpush2.bf16.msra.mxu0 0
    %90 = vmatprep.subr.bf16.mxu0 0
    %91 = vmatpush2.bf16.msra.mxu0 0
    %92 = vmatprep.subr.bf16.mxu0 0
    %93 = vmatpush2.bf16.msra.mxu0 0
    %94 = vmatprep.mubr.bf16.mxu0 0
    %95 = vmatmul.mubr.bf16.gmra.mxu0 %v49
    %v96 = vpop.f32.mrf.mxu0
    %v97 = vadd.f32 0.0, %v96
    %v98 = vpop.f32.mrf.mxu0
    %v99 = vpop.f32.mrf.mxu0
    %v100 = vadd.f32 0.0, %v99
    %v101 = vpop.f32.mrf.mxu0
    %102 = vdwg.mxu0
    %v103 = vld [vmem:[%s2] sm:$0x1]
    %v105 = vlaneseq
    %v106 = vshrl.u32 %v105, 7
    %v107 = vsub.s32 0, %v106
    %v108 = vrot.slane %v103, %v107
    %v110 = vmul.f32 %v97, %v108
    %v111 = vmul.f32 %v100, %v108
    %v112 = vld [vmem:[%s3] sm:$0x1]
    %v114 = vlaneseq
    %v115 = vshrl.u32 %v114, 7
    %v116 = vsub.s32 0, %v115
    %v117 = vrot.slane %v112, %v116
    %v119 = vadd.f32 %v110, %v117
    %v120 = vadd.f32 %v111, %v117
    %v121 = vpack.c.bf16 %v120, %v119
    %v123 = vunpack.c.l.b16 %v121
    %v124 = vunpack.c.h.b16 %v121
    %v125 = vpack.c.b16 %v123, %v123
    %v126 = vpack.c.b16 %v124, %v124
    %129 = vst [vmem:[#allocation7] sm:$0xf] %v125
    %130 = vst [vmem:[#allocation7 + $0x4] sm:$0xf] %v126
    // Predicated region
    $region26: #{tpu_custom_call.1} parent=1 // pred_check
      _
    $region27: #{tpu_custom_call.1} parent=1 // pred_check_branch
      %132 = sbr.rel (0) target = $region29
    $region28: #{tpu_custom_call.1} parent=1 // pred_region
      %s134 = ssub.s32 128, 128
      %135 = vsyncadd [#allocation4], %s134
      %s136 = sshll.u32 [#allocation7], 4
      %s137 = int_to_ptr.vmem [resolvable:$true] %s136
      %142 = dma.vmem_to_hbm [thread:$0]  %s137, 128, %s4, [#allocation4], 64, 64, 4
    $region29: #{tpu_custom_call.1} parent=1 // pred_fallthru
      _
    // Predicated region
    $region30: #{tpu_custom_call.1} parent=1 // pred_check
      _
    $region31: #{tpu_custom_call.1} parent=1 // pred_check_branch
      %144 = sbr.rel (0) target = $region33
    $region32: #{tpu_custom_call.1} parent=1 // pred_region
      %145 = dma.done [#allocation4], 128
    $region33: #{tpu_custom_call.1} parent=1 // pred_fallthru
      _
    %146 = vsyncpa [#allocation3], 1
    %147 = vsyncpa [#allocation6], 1
    %148 = vsyncpa [#allocation4], 1

</llo_original>
